<compile_context>
chip_gen: v5e
topology: v5e:2x2
jax: 0.10.0
libtpu: 0.0.40
codegen_flags: <defaults>
</compile_context>

<pallas_src>
import functools

import jax
import jax.numpy as jnp
from jax.experimental import pallas as pl
from jax.experimental.pallas import tpu as pltpu


# ----------------------------------------------------------------------------
# Fast path: VMEM-resident table, one-hot MXU gather.
# ----------------------------------------------------------------------------
def _onehot_gather_kernel(ids_ref, table_ref, out_ref):
    """out_tile = one_hot(ids) @ table  (table resident in VMEM)."""
    ids = ids_ref[...]                                   # (R, 1) int32, hashed
    rows = ids.shape[0]
    n = table_ref.shape[0]
    iota = jax.lax.broadcasted_iota(jnp.int32, (rows, n), 1)
    one_hot = (ids == iota).astype(table_ref.dtype)      # (R, N)
    out_ref[...] = jnp.dot(
        one_hot, table_ref[...], preferred_element_type=jnp.float32
    ).astype(out_ref.dtype)


# ----------------------------------------------------------------------------
# Slow path: table in HBM, windowed manual DMA gather straight into out tile.
# ----------------------------------------------------------------------------
def _hbm_gather_kernel(ids_ref, table_hbm, out_ref, sems, *, rows, window):
    """Gather `rows` table rows (hashed ids in SMEM) directly into the out tile."""
    tile = pl.program_id(0)
    base = pl.multiple_of(tile * rows, rows)

    def issue(r, slot):
        row = ids_ref[base + r]
        pltpu.make_async_copy(
            table_hbm.at[pl.ds(row, 1), :],        # (1, D) row in HBM
            out_ref.at[pl.ds(r, 1), :],            # land directly in the out tile
            sems.at[slot],
        ).start()

    # Prime the DMA window (static unroll; `window` is a small power of two).
    for r in range(window):
        issue(r, r % window)

    # Steady state: preload the next id BEFORE the wait (keeps the SMEM scalar
    # load off the wait critical path), wait row r, refill its slot with
    # row r + window.
    @pl.loop(0, rows)
    def _(r):
        nxt = r + window
        next_row = ids_ref[base + jnp.minimum(nxt, rows - 1)]

        pltpu.make_async_copy(
            table_hbm.at[pl.ds(0, 1), :],          # shape-only; the sem is what matters
            out_ref.at[pl.ds(r, 1), :],
            sems.at[r & (window - 1)],
        ).wait()

        @pl.when(nxt < rows)
        def _():
            pltpu.make_async_copy(
                table_hbm.at[pl.ds(next_row, 1), :],
                out_ref.at[pl.ds(nxt, 1), :],
                sems.at[nxt & (window - 1)],
            ).start()


# ----------------------------------------------------------------------------
# Wrapper / dispatch.
# ----------------------------------------------------------------------------
def user_id_embedding(input_ids: jax.Array, emb_table: jax.Array, *,
                      rows_per_tile: int | None = None,
                      dma_window: int = 32,
                      force_hbm_gather: bool = False) -> jax.Array:
    """Pallas equivalent of UserIdEmbedding.forward: emb_table[input_ids % N]."""
    B, T = input_ids.shape
    N, D = emb_table.shape
    BT = B * T
    dtype = emb_table.dtype

    # Hash hoisted out of the kernel (one vectorized XLA op over all ids).
    # jnp `%` matches torch `%` for a positive divisor.
    flat_ids = (input_ids.reshape(BT).astype(jnp.int32)) % N

    # Lane-dense embedding dim: pad D to a multiple of 128 (sliced off below).
    D_pad = max(128, ((D + 127) // 128) * 128)
    table = emb_table if D_pad == D else jnp.pad(emb_table, ((0, 0), (0, D_pad - D)))

    itemsize = jnp.dtype(dtype).itemsize
    table_bytes = N * D_pad * itemsize
    use_fast = (not force_hbm_gather) and (table_bytes <= (4 << 20)) and (N <= 4096)

    # Rows per grid step (multiple of 8, capped by the padded token count).
    if rows_per_tile is None:
        if use_fast:
            # keep the (R, N) one-hot tile around ~2 MiB of f32
            rows_per_tile = max(8, min(512, ((2 << 20) // (N * 4)) // 8 * 8))
        else:
            rows_per_tile = 512
    R = min(rows_per_tile, ((BT + 7) // 8) * 8)
    R = max(8, (R // 8) * 8)

    BT_pad = pl.cdiv(BT, R) * R
    if BT_pad != BT:
        # Padded ids gather row 0; the extra rows are sliced off below.
        flat_ids = jnp.pad(flat_ids, (0, BT_pad - BT))

    grid = (BT_pad // R,)
    out_shape = jax.ShapeDtypeStruct((BT_pad, D_pad), dtype)
    # NOTE: "parallel" lets the runtime shard tiles across v7x's 2 TensorCores;
    # on v5e/v6e (1 TC) it is a no-op.
    params = pltpu.CompilerParams(dimension_semantics=("parallel",))

    if use_fast:
        out_flat = pl.pallas_call(
            _onehot_gather_kernel,
            out_shape=out_shape,
            grid=grid,
            in_specs=[
                pl.BlockSpec((R, 1), lambda i: (i, 0)),          # hashed ids column
                pl.BlockSpec((N, D_pad), lambda i: (0, 0)),      # resident table
            ],
            out_specs=pl.BlockSpec((R, D_pad), lambda i: (i, 0)),
            compiler_params=params,
        )(flat_ids.reshape(BT_pad, 1), table)
    else:
        window = min(dma_window, R)
        window = 1 << (window.bit_length() - 1)    # power of two -> cheap `&` slots

        # TODO(synk): for very large B*T, chunk the id prefetch (second grid
        # axis / per-tile SMEM DMA) instead of placing all ids in SMEM at once.
        kernel = functools.partial(_hbm_gather_kernel, rows=R, window=window)
        grid_spec = pltpu.PrefetchScalarGridSpec(
            num_scalar_prefetch=1,
            grid=grid,
            in_specs=[pl.BlockSpec(memory_space=pl.ANY)],        # table stays in HBM
            out_specs=pl.BlockSpec((R, D_pad), lambda i, ids: (i, 0)),
            scratch_shapes=[pltpu.SemaphoreType.DMA((window,))],
        )
        out_flat = pl.pallas_call(
            kernel,
            out_shape=out_shape,
            grid_spec=grid_spec,
            compiler_params=params,
        )(flat_ids, table)

    return out_flat[:BT, :D].reshape(B, T, D)


if __name__ == "__main__":
    # Small, deterministic setup consistent with the module's forward pass.
    NUM_EMBEDDINGS = 64      # num_embeddings
    EMB_DIM = 128            # embeddings_dim (lane-aligned)
    B, T = 2, 8

    key = jax.random.PRNGKey(0)
    k_table, k_ids = jax.random.split(key)

    # nn.Embedding default init ~ N(0, 1).
    emb_table = jax.random.normal(k_table, (NUM_EMBEDDINGS, EMB_DIM),
                                  dtype=jnp.float32)
    # ids intentionally larger than NUM_EMBEDDINGS to exercise the hash (%).
    input_ids = jax.random.randint(k_ids, (B, T), 0, 10 * NUM_EMBEDDINGS,
                                   dtype=jnp.int32)

    ref = jnp.take(emb_table, input_ids % NUM_EMBEDDINGS, axis=0)

    # Fast path (VMEM-resident table + one-hot MXU gather) — default dispatch.
    out_fast = jax.block_until_ready(user_id_embedding(input_ids, emb_table))
    assert out_fast.shape == (B, T, EMB_DIM), out_fast.shape
    # Tolerance covers any MXU f32 multi-pass rounding; wrong-row gathers would
    # be O(1) off (rows ~ N(0,1)), so this still validates the gather logic.
    assert jnp.allclose(out_fast, ref, atol=1e-2, rtol=1e-2), "one-hot gather mismatch"

    # Slow path (HBM table + windowed DMA gather straight into the out tile).
    out_dma = jax.block_until_ready(
        user_id_embedding(input_ids, emb_table, force_hbm_gather=True))
    assert out_dma.shape == (B, T, EMB_DIM), out_dma.shape
    assert jnp.allclose(out_dma, ref), "DMA gather mismatch"

    print("KERNEL_OK")
</pallas_src>

<mosaic_0001>
module attributes {stable_mosaic.version = 11 : i64} {
  func.func @_onehot_gather_kernel(%arg0: i32, %arg1: memref<16x1xi32, #tpu.memory_space<vmem>>, %arg2: memref<64x128xf32, #tpu.memory_space<vmem>>, %arg3: memref<16x128xf32, #tpu.memory_space<vmem>>) attributes {dimension_semantics = [#tpu.dimension_semantics<parallel>], iteration_bounds = array<i64: 1>, scalar_prefetch = 0 : i64, scratch_operands = 0 : i64, tpu.core_type = #tpu.core_type<tc>, window_params = [{transform_indices = @transform_0, window_bounds = array<i64: 16, 1>}, {pipeline_mode = #tpu.pipeline_mode<synchronous>, transform_indices = @transform_1, window_bounds = array<i64: 64, 128>}, {transform_indices = @transform_2, window_bounds = array<i64: 16, 128>}]} {
    %c0 = arith.constant 0 : index
    %c0_0 = arith.constant 0 : index
    %0 = vector.load %arg1[%c0, %c0_0] : memref<16x1xi32, #tpu.memory_space<vmem>>, vector<16x1xi32>
    %1 = tpu.iota {dimensions = array<i32: 1>} : vector<16x64xi32>
    %2 = vector.broadcast %0 : vector<16x1xi32> to vector<16x64xi32>
    %3 = arith.cmpi eq, %2, %1 : vector<16x64xi32>
    %4 = arith.extui %3 : vector<16x64xi1> to vector<16x64xi32>
    %5 = arith.sitofp %4 : vector<16x64xi32> to vector<16x64xf32>
    %c0_1 = arith.constant 0 : index
    %c0_2 = arith.constant 0 : index
    %6 = vector.load %arg2[%c0_1, %c0_2] : memref<64x128xf32, #tpu.memory_space<vmem>>, vector<64x128xf32>
    %cst = arith.constant dense<0.000000e+00> : vector<16x128xf32>
    %7 = tpu.matmul %5, %6, %cst {dimension_numbers = #tpu.dot_dimension_numbers<[1], [0], [0], [1], [0, 0, 1, 1], [], []>} : vector<16x64xf32>, vector<64x128xf32>, vector<16x128xf32> -> vector<16x128xf32>
    %c0_3 = arith.constant 0 : index
    %c0_4 = arith.constant 0 : index
    %8 = vector.load %arg3[%c0_3, %c0_4] : memref<16x128xf32, #tpu.memory_space<vmem>>, vector<16x128xf32>
    tpu.vector_store %arg3[%c0_3, %c0_4], %7 {strides = array<i32>} : memref<16x128xf32, #tpu.memory_space<vmem>>, vector<16x128xf32>,
    return
  }
  func.func @transform_0(%arg0: i32) -> (i32, i32) {
    %c0_i32 = arith.constant 0 : i32
    %c0_i32_0 = arith.constant 0 : i32
    return %arg0, %c0_i32 : i32, i32
  }
  func.func @transform_1(%arg0: i32) -> (i32, i32) {
    %c0_i32 = arith.constant 0 : i32
    %c0_i32_0 = arith.constant 0 : i32
    %c0_i32_1 = arith.constant 0 : i32
    return %c0_i32, %c0_i32_0 : i32, i32
  }
  func.func @transform_2(%arg0: i32) -> (i32, i32) {
    %c0_i32 = arith.constant 0 : i32
    %c0_i32_0 = arith.constant 0 : i32
    return %arg0, %c0_i32 : i32, i32
  }
}

</mosaic_0001>

<llo_original>
// kernel: tpu_custom_call.1
$region0: #{tpu_custom_call.1}
  #allocation0 [shape = 'u32[]', space=smem, size = 0x4, offset = 0x4, fixed_abs, tag = 'smem constant byte address 0x4 - core index']
  #allocation1 [shape = 'u32[72,128]{1,0:T(1,128)}', space=vmem, size = 0x9000, scoped, tag = 'internal scratch']
  %s0 = inlined_call_operand.vmem [shape: s32[16,1], index: 0, kind: input, shape index: {}]
  %s1 = inlined_call_operand.hbm [shape: f32[64,128], index: 1, kind: input, shape index: {}]
  %s2 = inlined_call_operand.hbm [shape: f32[16,128], index: 2, kind: output, shape index: {}]
  %s3 = sld [smem:[#allocation0]]
  $region22: #{tpu_custom_call.1} parent=0
    _
  %s5 = ssub.s32 1, %s3
  %s6 = scalar_select 0, %s5, %s3
  $region1: #{tpu_custom_call.1} parent=0
    #allocation2 [shape = 'u8[32768]{0}', space=vmem, size = 0x8000, scoped, tag = 'input window, operand 1, single buffered']
    #allocation3 [shape = 's32[1]{0}', space=sflag, size = 0x4, scoped, tag = 'scoped memory for tpu_custom_call.1']
    #allocation4 [shape = 's32[1]{0}', space=sflag, size = 0x4, scoped, tag = 'scoped memory for tpu_custom_call.1']
    #allocation5 [shape = 'u8[8192]{0}', space=vmem, size = 0x2000, scoped, tag = 'output window, operand 0, single buffered']
    %7 = vsyncpa [#allocation3], 0
    %8 = vsyncpa [#allocation4], 0
    // Predicated region
    $region2: #{tpu_custom_call.1} parent=1 // pred_check
      _
    $region3: #{tpu_custom_call.1} parent=1 // pred_check_branch
      %10 = sbr.rel (0) target = $region5
    $region4: #{tpu_custom_call.1} parent=1 // pred_region
      _
    $region5: #{tpu_custom_call.1} parent=1 // pred_fallthru
      _
    // Predicated region
    $region6: #{tpu_custom_call.1} parent=1 // pred_check
      _
    $region7: #{tpu_custom_call.1} parent=1 // pred_check_branch
      %12 = sbr.rel (0) target = $region9
    $region8: #{tpu_custom_call.1} parent=1 // pred_region
      %14 = vsyncadd [#allocation3], 0
      %s15 = sshll.u32 %s1, 4
      %s16 = int_to_ptr.hbm [resolvable:$true] %s15
      %s17 = sshll.u32 [#allocation2], 4
      %s18 = int_to_ptr.vmem [resolvable:$true] %s17
      %23 = dma.hbm_to_vmem [thread:$0]  %s16, 1024, %s18, [#allocation3], 128, 128, 8
    $region9: #{tpu_custom_call.1} parent=1 // pred_fallthru
      _
    // Predicated region
    $region10: #{tpu_custom_call.1} parent=1 // pred_check
      _
    $region11: #{tpu_custom_call.1} parent=1 // pred_check_branch
      %25 = sbr.rel (0) target = $region13
    $region12: #{tpu_custom_call.1} parent=1 // pred_region
      %27 = dma.done [#allocation3], 1024
    $region13: #{tpu_custom_call.1} parent=1 // pred_fallthru
      _
    %v28 = vld [vmem:[%s0] sm:$0xff]
    %v29 = vld [vmem:[%s0 + $0x8] sm:$0xff]
    %v30 = vlaneseq
    %v31 = vand.u32 %v30, 127
    %32 = vset.pattern.permute.xlu0 0
    %33 = vperm.xlu0 %32, %v28
    %v34 = vpop.permute.xlu0 %33
    %35 = vset.pattern.permute.xlu0 0
    %36 = vperm.xlu0 %35, %v29
    %v37 = vpop.permute.xlu0 %36
    %vm38 = vcmp.eq.s32.totalorder %v34, %v31
    %vm39 = vcmp.eq.s32.totalorder %v37, %v31
    %v40 = vsel %vm38, 1, 0
    %v41 = vsel %vm39, 1, 0
    %v42 = vcvt.s32.f32 %v40
    %v43 = vcvt.s32.f32 %v41
    %v44 = vld [vmem:[#allocation2] sm:$0xff]
    %v45 = vld [vmem:[#allocation2 + $0x8] sm:$0xff]
    %v46 = vld [vmem:[#allocation2 + $0x10] sm:$0xff]
    %v47 = vld [vmem:[#allocation2 + $0x18] sm:$0xff]
    %v48 = vld [vmem:[#allocation2 + $0x20] sm:$0xff]
    %v49 = vld [vmem:[#allocation2 + $0x28] sm:$0xff]
    %v50 = vld [vmem:[#allocation2 + $0x30] sm:$0xff]
    %v51 = vld [vmem:[#allocation2 + $0x38] sm:$0xff]
    %vm52 = vcmask 523264
    %v54 = vsel %vm52, %v42, 0
    %v57 = vsel %vm52, %v43, 0
    %59 = vmatpush.msra.mxu0 0.0
    %60 = vmatpush.msra.mxu0 0.0
    %61 = vmatpush.msra.mxu0 0.0
    %62 = vmatpush.msra.mxu0 0.0
    %63 = vmatpush.msra.mxu0 0.0
    %64 = vmatpush.msra.mxu0 0.0
    %65 = vmatpush.msra.mxu0 0.0
    %66 = vmatpush.msra.mxu0 0.0
    %67 = vmatpush.msra.mxu0 %v51
    %68 = vmatpush.msra.mxu0 %v50
    %69 = vmatpush.msra.mxu0 %v49
    %70 = vmatpush.msra.mxu0 %v48
    %71 = vmatpush.msra.mxu0 %v47
    %72 = vmatpush.msra.mxu0 %v46
    %73 = vmatpush.msra.mxu0 %v45
    %74 = vmatpush.msra.mxu0 %v44
    %75 = vmatmul.f32.gmra.mxu0 %v54
    %v76 = vpop.f32.mrf.mxu0
    %v77 = vadd.f32 0.0, %v76
    %78 = vmatmul.f32.gmra.mxu0 %v57
    %v79 = vpop.f32.mrf.mxu0
    %v80 = vadd.f32 0.0, %v79
    %81 = vdwg.mxu0
    %82 = vst [vmem:[#allocation5] sm:$0xff] %v77
    %83 = vst [vmem:[#allocation5 + $0x8] sm:$0xff] %v80
    // Predicated region
    $region14: #{tpu_custom_call.1} parent=1 // pred_check
      _
    $region15: #{tpu_custom_call.1} parent=1 // pred_check_branch
      %85 = sbr.rel (0) target = $region17
    $region16: #{tpu_custom_call.1} parent=1 // pred_region
      %87 = vsyncadd [#allocation4], 0
      %s88 = sshll.u32 [#allocation5], 4
      %s89 = int_to_ptr.vmem [resolvable:$true] %s88
      %s90 = sshll.u32 %s2, 4
      %s91 = int_to_ptr.hbm [resolvable:$true] %s90
      %96 = dma.vmem_to_hbm [thread:$0]  %s89, 256, %s91, [#allocation4], 128, 128, 8
    $region17: #{tpu_custom_call.1} parent=1 // pred_fallthru
      _
    // Predicated region
    $region18: #{tpu_custom_call.1} parent=1 // pred_check
      _
    $region19: #{tpu_custom_call.1} parent=1 // pred_check_branch
      %98 = sbr.rel (0) target = $region21
    $region20: #{tpu_custom_call.1} parent=1 // pred_region
      %100 = dma.done [#allocation4], 256
    $region21: #{tpu_custom_call.1} parent=1 // pred_fallthru
      _
    %101 = vsyncpa [#allocation3], 1
    %102 = vsyncpa [#allocation4], 1

</llo_original>
